<compile_context>
chip_gen: v7x
topology: tpu7x:2x2x1
jax: 0.10.0
libtpu: 0.0.40
codegen_flags: <defaults>
</compile_context>

<pallas_src>
import functools

import jax
import jax.numpy as jnp
from jax.experimental import pallas as pl
from jax.experimental.pallas import tpu as pltpu


def _layernorm_kernel(x_ref, g_ref, o_ref, *, eps):
    # x_ref: (bn, C, tl) tile  -- C on sublanes, spatial tile on lanes.
    # g_ref: (C, 1) scale      -- broadcasts over the batch + lane axes.
    # o_ref: (bn, C, tl) output tile.
    x = x_ref[...].astype(jnp.float32)
    mean = jnp.mean(x, axis=1, keepdims=True)          # (bn, 1, tl)
    xc = x - mean
    var = jnp.mean(xc * xc, axis=1, keepdims=True)     # unbiased=False
    inv = jax.lax.rsqrt(var + eps)                     # EUP rsqrt (free slot)
    g = g_ref[...].astype(jnp.float32)                 # (C, 1) -> (bn, C, tl)
    o_ref[...] = (xc * inv * g).astype(o_ref.dtype)


def layernorm_nchw(x, g, *, block_bytes=2 << 20):
    """NAFNet LayerNorm forward. x: (N, C, H, W), g: (1, C, 1, 1)."""
    eps = 1e-5 if x.dtype == jnp.float32 else 1e-3
    N, C, H, W = x.shape
    L = H * W

    # Free views -- no transpose, no pad, no extra HBM traffic.
    x3 = x.reshape(N, C, L)
    g2 = g.reshape(C, 1)

    itemsize = jnp.dtype(x.dtype).itemsize

    # Lane-tile: largest multiple of 128 whose (1, C, tl) block fits the byte
    # budget.  A full-extent trailing dim is always a legal block shape, so if
    # the whole spatial extent fits we take it in one block and instead pack
    # several batch entries per block (bn) to keep grid steps coarse.
    tl = max(128, (block_bytes // (C * itemsize)) // 128 * 128)
    if tl >= L:
        tl = L
        bn = max(1, block_bytes // max(1, C * L * itemsize))
        bn = min(bn, N)
        while N % bn:           # largest divisor of N -> no partial lead block
            bn -= 1
    else:
        bn = 1
    # Partial trailing lane-block (L % tl != 0) is handled by Pallas: the math
    # is independent per lane, so OOB garbage lanes never mix into valid ones
    # and their stores are masked off.
    grid = (N // bn, pl.cdiv(L, tl))

    nbytes = N * C * L * itemsize
    cost = pl.CostEstimate(flops=5 * N * C * L,
                           transcendentals=N * L,
                           bytes_accessed=2 * nbytes)

    out3 = pl.pallas_call(
        functools.partial(_layernorm_kernel, eps=eps),
        out_shape=jax.ShapeDtypeStruct((N, C, L), x.dtype),
        grid_spec=pltpu.PrefetchScalarGridSpec(
            num_scalar_prefetch=0,
            grid=grid,
            in_specs=[
                pl.BlockSpec((bn, C, tl), lambda n, j: (n, 0, j)),
                pl.BlockSpec((C, 1), lambda n, j: (0, 0)),
            ],
            out_specs=pl.BlockSpec((bn, C, tl), lambda n, j: (n, 0, j)),
        ),
        compiler_params=pltpu.CompilerParams(
            dimension_semantics=("parallel", "parallel")),
        cost_estimate=cost,
    )(x3, g2)

    return out3.reshape(N, C, H, W)


def _reference(x, g):
    eps = 1e-5 if x.dtype == jnp.float32 else 1e-3
    xf = x.astype(jnp.float32)
    mean = jnp.mean(xf, axis=1, keepdims=True)
    var = jnp.mean((xf - mean) ** 2, axis=1, keepdims=True)
    out = (xf - mean) * jax.lax.rsqrt(var + eps) * g.astype(jnp.float32)
    return out.astype(x.dtype)


if __name__ == "__main__":
    key = jax.random.PRNGKey(0)

    # Case 1: the module's natural small shape (single block, bn-packed path).
    N, C, H, W = 2, 4, 16, 16
    x = jax.random.normal(key, (N, C, H, W), dtype=jnp.float32)
    g = jnp.ones((1, C, 1, 1), dtype=jnp.float32)   # torch.ones init
    out = jax.block_until_ready(layernorm_nchw(x, g))
    ref = _reference(x, g)
    assert out.shape == (N, C, H, W)
    assert jnp.allclose(out, ref, atol=1e-5, rtol=1e-5)

    # Case 2: force the tiled-lane path with a partial trailing block.
    N2, C2, H2, W2 = 2, 4, 12, 20                   # L = 240, tl = 128
    key2 = jax.random.PRNGKey(0)
    x2 = jax.random.normal(key2, (N2, C2, H2, W2), dtype=jnp.float32)
    g2 = jnp.ones((1, C2, 1, 1), dtype=jnp.float32)
    out2 = jax.block_until_ready(layernorm_nchw(x2, g2, block_bytes=2048))
    ref2 = _reference(x2, g2)
    assert jnp.allclose(out2, ref2, atol=1e-5, rtol=1e-5)

    print("KERNEL_OK")
</pallas_src>

<mosaic_0001>
module attributes {stable_mosaic.version = 11 : i64} {
  func.func @_layernorm_kernel(%arg0: i32, %arg1: i32, %arg2: memref<2x4x256xf32, #tpu.memory_space<vmem>>, %arg3: memref<4x1xf32, #tpu.memory_space<vmem>>, %arg4: memref<2x4x256xf32, #tpu.memory_space<vmem>>) attributes {dimension_semantics = [#tpu.dimension_semantics<parallel>, #tpu.dimension_semantics<parallel>], iteration_bounds = array<i64: 1, 1>, scalar_prefetch = 0 : i64, scratch_operands = 0 : i64, tpu.core_type = #tpu.core_type<tc>, window_params = [{transform_indices = @transform_0, window_bounds = array<i64: 2, 4, 256>}, {pipeline_mode = #tpu.pipeline_mode<synchronous>, transform_indices = @transform_1, window_bounds = array<i64: 4, 1>}, {transform_indices = @transform_2, window_bounds = array<i64: 2, 4, 256>}]} {
    %c0 = arith.constant 0 : index
    %c0_0 = arith.constant 0 : index
    %c0_1 = arith.constant 0 : index
    %0 = vector.load %arg2[%c0, %c0_0, %c0_1] : memref<2x4x256xf32, #tpu.memory_space<vmem>>, vector<2x4x256xf32>
    %cst = arith.constant dense<0.000000e+00> : vector<2x256xf32>
    %1 = vector.multi_reduction <add>, %0, %cst [1] : vector<2x4x256xf32> to vector<2x256xf32>
    %2 = vector.shape_cast %1 : vector<2x256xf32> to vector<2x1x256xf32>
    %cst_2 = arith.constant 4.000000e+00 : f32
    %3 = vector.broadcast %cst_2 : f32 to vector<2x1x256xf32>
    %4 = arith.divf %2, %3 : vector<2x1x256xf32>
    %5 = vector.broadcast %4 : vector<2x1x256xf32> to vector<2x4x256xf32>
    %6 = arith.subf %0, %5 : vector<2x4x256xf32>
    %7 = arith.mulf %6, %6 : vector<2x4x256xf32>
    %cst_3 = arith.constant dense<0.000000e+00> : vector<2x256xf32>
    %8 = vector.multi_reduction <add>, %7, %cst_3 [1] : vector<2x4x256xf32> to vector<2x256xf32>
    %9 = vector.shape_cast %8 : vector<2x256xf32> to vector<2x1x256xf32>
    %cst_4 = arith.constant 4.000000e+00 : f32
    %10 = vector.broadcast %cst_4 : f32 to vector<2x1x256xf32>
    %11 = arith.divf %9, %10 : vector<2x1x256xf32>
    %cst_5 = arith.constant 9.99999974E-6 : f32
    %12 = vector.broadcast %cst_5 : f32 to vector<2x1x256xf32>
    %13 = arith.addf %11, %12 : vector<2x1x256xf32>
    %14 = math.rsqrt %13 : vector<2x1x256xf32>
    %c0_6 = arith.constant 0 : index
    %c0_7 = arith.constant 0 : index
    %15 = vector.load %arg3[%c0_6, %c0_7] : memref<4x1xf32, #tpu.memory_space<vmem>>, vector<4x1xf32>
    %16 = vector.broadcast %14 : vector<2x1x256xf32> to vector<2x4x256xf32>
    %17 = arith.mulf %6, %16 : vector<2x4x256xf32>
    %18 = vector.shape_cast %15 : vector<4x1xf32> to vector<1x4x1xf32>
    %19 = vector.broadcast %18 : vector<1x4x1xf32> to vector<2x4x256xf32>
    %20 = arith.mulf %17, %19 : vector<2x4x256xf32>
    %c0_8 = arith.constant 0 : index
    %c0_9 = arith.constant 0 : index
    %c0_10 = arith.constant 0 : index
    %21 = vector.load %arg4[%c0_8, %c0_9, %c0_10] : memref<2x4x256xf32, #tpu.memory_space<vmem>>, vector<2x4x256xf32>
    tpu.vector_store %arg4[%c0_8, %c0_9, %c0_10], %20 {strides = array<i32>} : memref<2x4x256xf32, #tpu.memory_space<vmem>>, vector<2x4x256xf32>,
    return
  }
  func.func @transform_0(%arg0: i32, %arg1: i32) -> (i32, i32, i32) {
    %c0_i32 = arith.constant 0 : i32
    %c0_i32_0 = arith.constant 0 : i32
    return %arg0, %c0_i32, %arg1 : i32, i32, i32
  }
  func.func @transform_1(%arg0: i32, %arg1: i32) -> (i32, i32) {
    %c0_i32 = arith.constant 0 : i32
    %c0_i32_0 = arith.constant 0 : i32
    %c0_i32_1 = arith.constant 0 : i32
    return %c0_i32, %c0_i32_0 : i32, i32
  }
  func.func @transform_2(%arg0: i32, %arg1: i32) -> (i32, i32, i32) {
    %c0_i32 = arith.constant 0 : i32
    %c0_i32_0 = arith.constant 0 : i32
    return %arg0, %c0_i32, %arg1 : i32, i32, i32
  }
}

</mosaic_0001>

<llo_original>
// kernel: tpu_custom_call.1
$region0: #{tpu_custom_call.1}
  #allocation0 [shape = 'u32[]', space=smem, size = 0x4, offset = 0x4, fixed_abs, tag = 'smem constant byte address 0x4 - core index']
  #allocation1 [shape = 'u32[144,128]{1,0:T(1,128)}', space=vmem, size = 0x12000, scoped, tag = 'internal scratch']
  %s0 = inlined_call_operand.hbm [shape: f32[2,4,256], index: 0, kind: input, shape index: {}]
  %s1 = inlined_call_operand.vmem [shape: f32[4,1], index: 1, kind: input, shape index: {}]
  %s2 = inlined_call_operand.hbm [shape: f32[2,4,256], index: 2, kind: output, shape index: {}]
  %s3 = sld [smem:[#allocation0]]
  $region22: #{tpu_custom_call.1} parent=0
    _
  %s5 = ssub.s32 1, %s3
  %s6 = scalar_select 0, %s5, %s3
  $region1: #{tpu_custom_call.1} parent=0
    #allocation2 [shape = 'u8[8192]{0}', space=vmem, size = 0x2000, scoped, tag = 'input window, operand 0, single buffered']
    #allocation3 [shape = 's32[1]{0}', space=sflag, size = 0x4, scoped, tag = 'scoped memory for tpu_custom_call.1']
    #allocation4 [shape = 's32[1]{0}', space=sflag, size = 0x4, scoped, tag = 'scoped memory for tpu_custom_call.1']
    #allocation5 [shape = 'u8[8192]{0}', space=vmem, size = 0x2000, scoped, tag = 'output window, operand 0, single buffered']
    %7 = vsyncpa [#allocation3], 0
    %8 = vsyncpa [#allocation4], 0
    // Predicated region
    $region2: #{tpu_custom_call.1} parent=1 // pred_check
      _
    $region3: #{tpu_custom_call.1} parent=1 // pred_check_branch
      %10 = sbr.rel (0) target = $region5
    $region4: #{tpu_custom_call.1} parent=1 // pred_region
      %s12 = ssub.s32 256, 256
      %13 = vsyncadd [#allocation3], %s12
      %s14 = sshll.u32 [#allocation2], 4
      %s15 = int_to_ptr.vmem [resolvable:$true] %s14
      %20 = dma.hbm_to_vmem [thread:$0]  %s0, 256, %s15, [#allocation3], 128, 128, 8
    $region5: #{tpu_custom_call.1} parent=1 // pred_fallthru
      _
    // Predicated region
    $region6: #{tpu_custom_call.1} parent=1 // pred_check
      _
    $region7: #{tpu_custom_call.1} parent=1 // pred_check_branch
      %22 = sbr.rel (0) target = $region9
    $region8: #{tpu_custom_call.1} parent=1 // pred_region
      _
    $region9: #{tpu_custom_call.1} parent=1 // pred_fallthru
      _
    // Predicated region
    $region10: #{tpu_custom_call.1} parent=1 // pred_check
      _
    $region11: #{tpu_custom_call.1} parent=1 // pred_check_branch
      %24 = sbr.rel (0) target = $region13
    $region12: #{tpu_custom_call.1} parent=1 // pred_region
      %25 = dma.done [#allocation3], 256
    $region13: #{tpu_custom_call.1} parent=1 // pred_fallthru
      _
    %v26 = vld [vmem:[#allocation2] sm:$0xff]
    %v27 = vld [vmem:[#allocation2 + $0x8] sm:$0xff]
    %v30 = vcombine.high %v26, %v26
    %v31 = vcombine.high %v27, %v27
    %vm34 = vcmask 1043456
    %v35 = vsel %vm34, %v26, 0.0
    %v36 = vrot.slane %v35, 4
    %v37 = vadd.f32 %v35, %v36
    %v38 = vrot.slane %v37, 2
    %v39 = vadd.f32 %v37, %v38
    %v40 = vrot.slane %v39, 1
    %v41 = vadd.f32 %v39, %v40
    %v42 = vsel %vm34, %v30, 0.0
    %v43 = vrot.slane %v42, 4
    %v44 = vadd.f32 %v42, %v43
    %v45 = vrot.slane %v44, 2
    %v46 = vadd.f32 %v44, %v45
    %v47 = vrot.slane %v46, 1
    %v48 = vadd.f32 %v46, %v47
    %v49 = vsel %vm34, %v27, 0.0
    %v50 = vrot.slane %v49, 4
    %v51 = vadd.f32 %v49, %v50
    %v52 = vrot.slane %v51, 2
    %v53 = vadd.f32 %v51, %v52
    %v54 = vrot.slane %v53, 1
    %v55 = vadd.f32 %v53, %v54
    %v56 = vsel %vm34, %v31, 0.0
    %v57 = vrot.slane %v56, 4
    %v58 = vadd.f32 %v56, %v57
    %v59 = vrot.slane %v58, 2
    %v60 = vadd.f32 %v58, %v59
    %v61 = vrot.slane %v60, 1
    %v62 = vadd.f32 %v60, %v61
    %v63 = vrcp.pop 4.0
    %v64 = vmul.f32 %v41, %v63
    %v65 = vmul.f32 %v48, %v63
    %v66 = vmul.f32 %v55, %v63
    %v67 = vmul.f32 %v62, %v63
    %v72 = vcombine.low %v64, %v65
    %v73 = vcombine.low %v66, %v67
    %v76 = vsub.f32 %v26, %v72
    %v77 = vsub.f32 %v27, %v73
    %v78 = vmul.f32 %v76, %v76
    %v79 = vmul.f32 %v77, %v77
    %v82 = vcombine.high %v78, %v78
    %v83 = vcombine.high %v79, %v79
    %v86 = vsel %vm34, %v78, 0.0
    %v87 = vrot.slane %v86, 4
    %v88 = vadd.f32 %v86, %v87
    %v89 = vrot.slane %v88, 2
    %v90 = vadd.f32 %v88, %v89
    %v91 = vrot.slane %v90, 1
    %v92 = vadd.f32 %v90, %v91
    %v93 = vsel %vm34, %v82, 0.0
    %v94 = vrot.slane %v93, 4
    %v95 = vadd.f32 %v93, %v94
    %v96 = vrot.slane %v95, 2
    %v97 = vadd.f32 %v95, %v96
    %v98 = vrot.slane %v97, 1
    %v99 = vadd.f32 %v97, %v98
    %v100 = vsel %vm34, %v79, 0.0
    %v101 = vrot.slane %v100, 4
    %v102 = vadd.f32 %v100, %v101
    %v103 = vrot.slane %v102, 2
    %v104 = vadd.f32 %v102, %v103
    %v105 = vrot.slane %v104, 1
    %v106 = vadd.f32 %v104, %v105
    %v107 = vsel %vm34, %v83, 0.0
    %v108 = vrot.slane %v107, 4
    %v109 = vadd.f32 %v107, %v108
    %v110 = vrot.slane %v109, 2
    %v111 = vadd.f32 %v109, %v110
    %v112 = vrot.slane %v111, 1
    %v113 = vadd.f32 %v111, %v112
    %v114 = vmul.f32 %v92, %v63
    %v115 = vmul.f32 %v99, %v63
    %v116 = vmul.f32 %v106, %v63
    %v117 = vmul.f32 %v113, %v63
    %v118 = vadd.f32 %v114, 1e-05
    %v119 = vadd.f32 %v115, 1e-05
    %v120 = vadd.f32 %v116, 1e-05
    %v121 = vadd.f32 %v117, 1e-05
    %v122 = vrsqrt.pop %v118
    %v123 = vrsqrt.pop %v119
    %v124 = vrsqrt.pop %v120
    %v125 = vrsqrt.pop %v121
    %v126 = vld [vmem:[%s1] sm:$0xf]
    %v131 = vcombine.low %v122, %v123
    %v132 = vcombine.low %v124, %v125
    %v135 = vmul.f32 %v76, %v131
    %v136 = vmul.f32 %v77, %v132
    %138 = vset.pattern.permute.xlu0 0
    %139 = vperm.xlu0 %138, %v126
    %v140 = vpop.permute.xlu0 %139
    %v142 = vunpack.c.l.s4 839922192
    %v143 = vunpack.c.0.s8 %v142
    %v144 = vlaneseq
    %v145 = vshrl.u32 %v144, 7
    %v146 = vsub.s32 %v143, %v145
    %v147 = vrot.slane %v140, %v146
    %v149 = vmul.f32 %v135, %v147
    %v150 = vmul.f32 %v136, %v147
    %151 = vst [vmem:[#allocation5] sm:$0xff] %v149
    %152 = vst [vmem:[#allocation5 + $0x8] sm:$0xff] %v150
    // Predicated region
    $region14: #{tpu_custom_call.1} parent=1 // pred_check
      _
    $region15: #{tpu_custom_call.1} parent=1 // pred_check_branch
      %154 = sbr.rel (0) target = $region17
    $region16: #{tpu_custom_call.1} parent=1 // pred_region
      %s156 = ssub.s32 256, 256
      %157 = vsyncadd [#allocation4], %s156
      %s158 = sshll.u32 [#allocation5], 4
      %s159 = int_to_ptr.vmem [resolvable:$true] %s158
      %164 = dma.vmem_to_hbm [thread:$0]  %s159, 256, %s2, [#allocation4], 128, 128, 8
    $region17: #{tpu_custom_call.1} parent=1 // pred_fallthru
      _
    // Predicated region
    $region18: #{tpu_custom_call.1} parent=1 // pred_check
      _
    $region19: #{tpu_custom_call.1} parent=1 // pred_check_branch
      %166 = sbr.rel (0) target = $region21
    $region20: #{tpu_custom_call.1} parent=1 // pred_region
      %167 = dma.done [#allocation4], 256
    $region21: #{tpu_custom_call.1} parent=1 // pred_fallthru
      _
    %168 = vsyncpa [#allocation3], 1
    %169 = vsyncpa [#allocation4], 1

</llo_original>
